<compile_context>
chip_gen: v7x
topology: tpu7x:2x2x1
jax: 0.10.0
libtpu: 0.0.40
codegen_flags: <defaults>
</compile_context>

<pallas_src>
import jax
import jax.numpy as jnp
from jax.experimental import pallas as pl
from jax.experimental.pallas import tpu as pltpu

_EPS = 1e-5                        # InstanceNorm2d default eps
_EPS_Z = _EPS * 510.0 * 510.0      # exact eps rescaling for the fused pre-norm value


# ---------------------------------------------------------------------------
# Pallas kernel: one block of B samples per grid step
# ---------------------------------------------------------------------------

def _ltpe_kernel(x_ref, o_ref, g_ref):
    # x_ref: (B, 3, H, W)    first three channels of B samples (original dtype)
    # o_ref: (B, H, W)       normalized single-channel output (f32)
    # g_ref: (B, H+2, W+2)   VMEM scratch: zero-padded grayscale planes
    B, H, W = o_ref.shape

    # ---- grayscale (cast to f32 inside the kernel; input stays narrow in HBM)
    x = x_ref[...].astype(jnp.float32)                        # (B, 3, H, W)
    gray = 0.3 * x[:, 0] + 0.59 * x[:, 1] + 0.11 * x[:, 2]    # (B, H, W)

    # ---- zero-padded plane in VMEM (reproduces conv2d's padding=1 zeros)
    g_ref[...] = jnp.zeros_like(g_ref)
    g_ref[:, 1:H + 1, 1:W + 1] = gray

    # ---- three shared column(lane)-shifted planes; the per-direction row
    #      shifts below are cheap sublane-offset slices of these.
    c_m1 = g_ref[:, :, 0:W]          # dj = -1
    c_c = g_ref[:, :, 1:W + 1]       # dj =  0
    c_p1 = g_ref[:, :, 2:W + 2]      # dj = +1

    # ---- fused 8-direction LTPE accumulation.
    # Neighbor (di, dj) -> weight 2^j:
    #   (0,-1)->1  (1,-1)->2  (1,0)->4  (1,1)->8  (0,1)->16  (-1,1)->32
    #   (-1,0)->64 (-1,-1)->128        (sum of weights = 255)
    s = (1.0 * c_m1[:, 1:H + 1] + 2.0 * c_m1[:, 2:H + 2] + 128.0 * c_m1[:, 0:H]
         + 4.0 * c_c[:, 2:H + 2] + 64.0 * c_c[:, 0:H]
         + 8.0 * c_p1[:, 2:H + 2] + 16.0 * c_p1[:, 1:H + 1] + 32.0 * c_p1[:, 0:H])
    z = 255.0 * gray - s                                      # (B, H, W)

    # ---- per-sample instance norm, single-pass statistics.
    # Original pre-norm value acc = (z + 255)/510, so
    #   InstanceNorm(acc) == (z - mean_z) * rsqrt(var_z + 510^2 * eps)   (exact).
    hw = float(H * W)
    s1 = jnp.sum(jnp.sum(z, axis=-1, keepdims=True), axis=-2, keepdims=True)
    s2 = jnp.sum(jnp.sum(z * z, axis=-1, keepdims=True), axis=-2, keepdims=True)
    mean = s1 / hw
    var = s2 / hw - mean * mean
    y = (z - mean) * jax.lax.rsqrt(var + _EPS_Z)

    o_ref[...] = y.astype(o_ref.dtype)


# ---------------------------------------------------------------------------
# Wrapper
# ---------------------------------------------------------------------------

def _pick_samples_per_block(N, H, W, in_itemsize):
    """Batch several samples per grid step for tiny planes (amortizes the
    per-step grid overhead) while keeping >=2 grid steps for the v7x megacore
    when possible and staying well inside VMEM."""
    per_sample = (2 * 3 * H * W * in_itemsize   # double-buffered input block
                  + 2 * H * W * 4               # double-buffered output block
                  + (H + 2) * (W + 2) * 4)      # padded-gray scratch
    budget = 8 << 20                            # conservative per-step budget
    best = 1
    for b in range(1, min(N, 16) + 1):
        if N % b:
            continue
        if b * per_sample > budget:
            break
        if (N // b) >= 2 or N == 1:
            best = b
    return best


def get_ltpe_pallas(x_nchw, samples_per_block=None):
    """x_nchw: (N, C>=3, H, W) -> (N, 3, H, W) float32."""
    N, C, H, W = x_nchw.shape
    assert C >= 3, "Get_ltpe uses the first three input channels"
    itemsize = jnp.dtype(x_nchw.dtype).itemsize

    B = samples_per_block or _pick_samples_per_block(N, H, W, itemsize)
    assert N % B == 0
    grid = (N // B,)

    # Explicit scoped-VMEM limit: cover the double-buffered blocks + scratch
    # with headroom, capped at 64 MiB (v7x physical VMEM per TC).
    in_bytes = B * 3 * H * W * itemsize
    out_bytes = B * H * W * 4
    scratch_bytes = B * (H + 2) * (W + 2) * 4
    est = 2 * (in_bytes + out_bytes) + scratch_bytes
    vmem_limit = int(min(max(4 * est + (2 << 20), 32 << 20), 64 << 20))
    # TODO(synk): if `est` ever approaches the 64 MiB cap, switch to spatial
    # (H) tiling with a two-pass instance norm instead of one plane per step.

    out1 = pl.pallas_call(
        _ltpe_kernel,
        out_shape=jax.ShapeDtypeStruct((N, H, W), jnp.float32),
        grid=grid,
        in_specs=[
            # only the first 3 channels are needed (channel block of 3, index 0)
            pl.BlockSpec((B, 3, H, W), lambda n: (n, 0, 0, 0)),
        ],
        out_specs=pl.BlockSpec((B, H, W), lambda n: (n, 0, 0)),
        scratch_shapes=[pltpu.VMEM((B, H + 2, W + 2), jnp.float32)],
        compiler_params=pltpu.CompilerParams(
            dimension_semantics=("parallel",),
            vmem_limit_bytes=vmem_limit),
    )(x_nchw)

    # Module semantics: replicate the normalized plane to 3 channels.
    return jnp.broadcast_to(out1[:, None, :, :], (N, 3, H, W))


# ---------------------------------------------------------------------------
# Pure-JAX reference (mirrors the PyTorch module exactly) for a sanity check
# ---------------------------------------------------------------------------

_KERNELS = (
    [[0, 0, 0], [-1, 1, 0], [0, 0, 0]],   # kernel0
    [[0, 0, 0], [0, 1, 0], [-1, 0, 0]],   # kernel1
    [[0, 0, 0], [0, 1, 0], [0, -1, 0]],   # kernel2
    [[0, 0, 0], [0, 1, 0], [0, 0, -1]],   # kernel3
    [[0, 0, 0], [0, 1, -1], [0, 0, 0]],   # kernel4
    [[0, 0, -1], [0, 1, 0], [0, 0, 0]],   # kernel5
    [[0, -1, 0], [0, 1, 0], [0, 0, 0]],   # kernel6
    [[-1, 0, 0], [0, 1, 0], [0, 0, 0]],   # kernel7
)


def get_ltpe_reference(x_nchw):
    x = x_nchw.astype(jnp.float32)
    gray = (0.3 * x[:, 0] + 0.59 * x[:, 1] + 0.11 * x[:, 2])[:, None]  # (N,1,H,W)
    out = jnp.zeros_like(gray)
    for j, k in enumerate(_KERNELS):
        w = jnp.asarray(k, jnp.float32)[None, None]                    # (1,1,3,3)
        y = jax.lax.conv_general_dilated(
            gray, w, (1, 1), ((1, 1), (1, 1)),
            dimension_numbers=("NCHW", "OIHW", "NCHW"),
            precision=jax.lax.Precision.HIGHEST)
        y = (y + 1.0) * 0.5
        out = out + y * (2 ** j) / 255.0
    mean = out.mean(axis=(2, 3), keepdims=True)
    var = ((out - mean) ** 2).mean(axis=(2, 3), keepdims=True)
    out = (out - mean) / jnp.sqrt(var + _EPS)
    return jnp.concatenate([out, out, out], axis=1)


# ---------------------------------------------------------------------------
# Main
# ---------------------------------------------------------------------------

if __name__ == "__main__":
    N, C, H, W = 2, 4, 16, 16
    key = jax.random.PRNGKey(0)
    x = jax.random.normal(key, (N, C, H, W), jnp.float32)

    out = jax.block_until_ready(get_ltpe_pallas(x))

    ref = jax.block_until_ready(get_ltpe_reference(x))
    max_err = float(jnp.max(jnp.abs(out - ref)))
    assert out.shape == (N, 3, H, W) and max_err < 1e-4, f"max_err={max_err}"

    print("KERNEL_OK")
</pallas_src>

<mosaic_0001>
module attributes {stable_mosaic.version = 11 : i64} {
  func.func @_ltpe_kernel(%arg0: i32, %arg1: memref<1x3x16x16xf32, #tpu.memory_space<vmem>>, %arg2: memref<1x16x16xf32, #tpu.memory_space<vmem>>, %arg3: memref<1x18x18xf32, #tpu.memory_space<vmem>>) attributes {dimension_semantics = [#tpu.dimension_semantics<parallel>], iteration_bounds = array<i64: 2>, scalar_prefetch = 0 : i64, scratch_operands = 1 : i64, tpu.core_type = #tpu.core_type<tc>, window_params = [{transform_indices = @transform_0, window_bounds = array<i64: 1, 3, 16, 16>}, {transform_indices = @transform_1, window_bounds = array<i64: 1, 16, 16>}]} {
    %c0 = arith.constant 0 : index
    %c0_0 = arith.constant 0 : index
    %c0_1 = arith.constant 0 : index
    %c0_2 = arith.constant 0 : index
    %0 = vector.load %arg1[%c0, %c0_0, %c0_1, %c0_2] : memref<1x3x16x16xf32, #tpu.memory_space<vmem>>, vector<1x3x16x16xf32>
    %1 = vector.extract_strided_slice %0 {offsets = [0, 0, 0, 0], sizes = [1, 1, 16, 16], strides = [1, 1, 1, 1]} : vector<1x3x16x16xf32> to vector<1x1x16x16xf32>
    %2 = vector.shape_cast %1 : vector<1x1x16x16xf32> to vector<1x16x16xf32>
    %cst = arith.constant 3.000000e-01 : f32
    %3 = vector.broadcast %cst : f32 to vector<1x16x16xf32>
    %4 = arith.mulf %3, %2 : vector<1x16x16xf32>
    %5 = vector.extract_strided_slice %0 {offsets = [0, 1, 0, 0], sizes = [1, 1, 16, 16], strides = [1, 1, 1, 1]} : vector<1x3x16x16xf32> to vector<1x1x16x16xf32>
    %6 = vector.shape_cast %5 : vector<1x1x16x16xf32> to vector<1x16x16xf32>
    %cst_3 = arith.constant 5.900000e-01 : f32
    %7 = vector.broadcast %cst_3 : f32 to vector<1x16x16xf32>
    %8 = arith.mulf %7, %6 : vector<1x16x16xf32>
    %9 = arith.addf %4, %8 : vector<1x16x16xf32>
    %10 = vector.extract_strided_slice %0 {offsets = [0, 2, 0, 0], sizes = [1, 1, 16, 16], strides = [1, 1, 1, 1]} : vector<1x3x16x16xf32> to vector<1x1x16x16xf32>
    %11 = vector.shape_cast %10 : vector<1x1x16x16xf32> to vector<1x16x16xf32>
    %cst_4 = arith.constant 1.100000e-01 : f32
    %12 = vector.broadcast %cst_4 : f32 to vector<1x16x16xf32>
    %13 = arith.mulf %12, %11 : vector<1x16x16xf32>
    %14 = arith.addf %9, %13 : vector<1x16x16xf32>
    %cst_5 = arith.constant 0.000000e+00 : f32
    %15 = vector.broadcast %cst_5 : f32 to vector<1x18x18xf32>
    %c0_6 = arith.constant 0 : index
    %c0_7 = arith.constant 0 : index
    %c0_8 = arith.constant 0 : index
    %16 = vector.load %arg3[%c0_6, %c0_7, %c0_8] : memref<1x18x18xf32, #tpu.memory_space<vmem>>, vector<1x18x18xf32>
    tpu.vector_store %arg3[%c0_6, %c0_7, %c0_8], %15 {strides = array<i32>} : memref<1x18x18xf32, #tpu.memory_space<vmem>>, vector<1x18x18xf32>,
    %c0_9 = arith.constant 0 : index
    %c1 = arith.constant 1 : index
    %c1_10 = arith.constant 1 : index
    %17 = vector.load %arg3[%c0_9, %c1, %c1_10] : memref<1x18x18xf32, #tpu.memory_space<vmem>>, vector<1x16x16xf32>
    tpu.vector_store %arg3[%c0_9, %c1, %c1_10], %14 {strides = array<i32>} : memref<1x18x18xf32, #tpu.memory_space<vmem>>, vector<1x16x16xf32>,
    %c0_11 = arith.constant 0 : index
    %c0_12 = arith.constant 0 : index
    %c0_13 = arith.constant 0 : index
    %18 = vector.load %arg3[%c0_11, %c0_12, %c0_13] : memref<1x18x18xf32, #tpu.memory_space<vmem>>, vector<1x18x16xf32>
    %c0_14 = arith.constant 0 : index
    %c0_15 = arith.constant 0 : index
    %c1_16 = arith.constant 1 : index
    %19 = vector.load %arg3[%c0_14, %c0_15, %c1_16] : memref<1x18x18xf32, #tpu.memory_space<vmem>>, vector<1x18x16xf32>
    %c0_17 = arith.constant 0 : index
    %c0_18 = arith.constant 0 : index
    %c2 = arith.constant 2 : index
    %20 = vector.load %arg3[%c0_17, %c0_18, %c2] : memref<1x18x18xf32, #tpu.memory_space<vmem>>, vector<1x18x16xf32>
    %21 = vector.extract_strided_slice %18 {offsets = [0, 1, 0], sizes = [1, 16, 16], strides = [1, 1, 1]} : vector<1x18x16xf32> to vector<1x16x16xf32>
    %cst_19 = arith.constant 1.000000e+00 : f32
    %22 = vector.broadcast %cst_19 : f32 to vector<1x16x16xf32>
    %23 = arith.mulf %22, %21 : vector<1x16x16xf32>
    %24 = vector.extract_strided_slice %18 {offsets = [0, 2, 0], sizes = [1, 16, 16], strides = [1, 1, 1]} : vector<1x18x16xf32> to vector<1x16x16xf32>
    %cst_20 = arith.constant 2.000000e+00 : f32
    %25 = vector.broadcast %cst_20 : f32 to vector<1x16x16xf32>
    %26 = arith.mulf %25, %24 : vector<1x16x16xf32>
    %27 = arith.addf %23, %26 : vector<1x16x16xf32>
    %28 = vector.extract_strided_slice %18 {offsets = [0, 0, 0], sizes = [1, 16, 16], strides = [1, 1, 1]} : vector<1x18x16xf32> to vector<1x16x16xf32>
    %cst_21 = arith.constant 1.280000e+02 : f32
    %29 = vector.broadcast %cst_21 : f32 to vector<1x16x16xf32>
    %30 = arith.mulf %29, %28 : vector<1x16x16xf32>
    %31 = arith.addf %27, %30 : vector<1x16x16xf32>
    %32 = vector.extract_strided_slice %19 {offsets = [0, 2, 0], sizes = [1, 16, 16], strides = [1, 1, 1]} : vector<1x18x16xf32> to vector<1x16x16xf32>
    %cst_22 = arith.constant 4.000000e+00 : f32
    %33 = vector.broadcast %cst_22 : f32 to vector<1x16x16xf32>
    %34 = arith.mulf %33, %32 : vector<1x16x16xf32>
    %35 = arith.addf %31, %34 : vector<1x16x16xf32>
    %36 = vector.extract_strided_slice %19 {offsets = [0, 0, 0], sizes = [1, 16, 16], strides = [1, 1, 1]} : vector<1x18x16xf32> to vector<1x16x16xf32>
    %cst_23 = arith.constant 6.400000e+01 : f32
    %37 = vector.broadcast %cst_23 : f32 to vector<1x16x16xf32>
    %38 = arith.mulf %37, %36 : vector<1x16x16xf32>
    %39 = arith.addf %35, %38 : vector<1x16x16xf32>
    %40 = vector.extract_strided_slice %20 {offsets = [0, 2, 0], sizes = [1, 16, 16], strides = [1, 1, 1]} : vector<1x18x16xf32> to vector<1x16x16xf32>
    %cst_24 = arith.constant 8.000000e+00 : f32
    %41 = vector.broadcast %cst_24 : f32 to vector<1x16x16xf32>
    %42 = arith.mulf %41, %40 : vector<1x16x16xf32>
    %43 = arith.addf %39, %42 : vector<1x16x16xf32>
    %44 = vector.extract_strided_slice %20 {offsets = [0, 1, 0], sizes = [1, 16, 16], strides = [1, 1, 1]} : vector<1x18x16xf32> to vector<1x16x16xf32>
    %cst_25 = arith.constant 1.600000e+01 : f32
    %45 = vector.broadcast %cst_25 : f32 to vector<1x16x16xf32>
    %46 = arith.mulf %45, %44 : vector<1x16x16xf32>
    %47 = arith.addf %43, %46 : vector<1x16x16xf32>
    %48 = vector.extract_strided_slice %20 {offsets = [0, 0, 0], sizes = [1, 16, 16], strides = [1, 1, 1]} : vector<1x18x16xf32> to vector<1x16x16xf32>
    %cst_26 = arith.constant 3.200000e+01 : f32
    %49 = vector.broadcast %cst_26 : f32 to vector<1x16x16xf32>
    %50 = arith.mulf %49, %48 : vector<1x16x16xf32>
    %51 = arith.addf %47, %50 : vector<1x16x16xf32>
    %cst_27 = arith.constant 2.550000e+02 : f32
    %52 = vector.broadcast %cst_27 : f32 to vector<1x16x16xf32>
    %53 = arith.mulf %52, %14 : vector<1x16x16xf32>
    %54 = arith.subf %53, %51 : vector<1x16x16xf32>
    %cst_28 = arith.constant dense<0.000000e+00> : vector<1x16xf32>
    %55 = vector.multi_reduction <add>, %54, %cst_28 [2] : vector<1x16x16xf32> to vector<1x16xf32>
    %56 = vector.shape_cast %55 : vector<1x16xf32> to vector<1x16x1xf32>
    %cst_29 = arith.constant dense<0.000000e+00> : vector<1x1xf32>
    %57 = vector.multi_reduction <add>, %56, %cst_29 [1] : vector<1x16x1xf32> to vector<1x1xf32>
    %58 = vector.shape_cast %57 : vector<1x1xf32> to vector<1x1x1xf32>
    %59 = arith.mulf %54, %54 : vector<1x16x16xf32>
    %cst_30 = arith.constant dense<0.000000e+00> : vector<1x16xf32>
    %60 = vector.multi_reduction <add>, %59, %cst_30 [2] : vector<1x16x16xf32> to vector<1x16xf32>
    %61 = vector.shape_cast %60 : vector<1x16xf32> to vector<1x16x1xf32>
    %cst_31 = arith.constant dense<0.000000e+00> : vector<1x1xf32>
    %62 = vector.multi_reduction <add>, %61, %cst_31 [1] : vector<1x16x1xf32> to vector<1x1xf32>
    %63 = vector.shape_cast %62 : vector<1x1xf32> to vector<1x1x1xf32>
    %cst_32 = arith.constant 2.560000e+02 : f32
    %64 = vector.broadcast %cst_32 : f32 to vector<1x1x1xf32>
    %65 = arith.divf %58, %64 : vector<1x1x1xf32>
    %cst_33 = arith.constant 2.560000e+02 : f32
    %66 = vector.broadcast %cst_33 : f32 to vector<1x1x1xf32>
    %67 = arith.divf %63, %66 : vector<1x1x1xf32>
    %68 = arith.mulf %65, %65 : vector<1x1x1xf32>
    %69 = arith.subf %67, %68 : vector<1x1x1xf32>
    %70 = vector.broadcast %65 : vector<1x1x1xf32> to vector<1x16x16xf32>
    %71 = arith.subf %54, %70 : vector<1x16x16xf32>
    %cst_34 = arith.constant 2.601000e+00 : f32
    %72 = vector.broadcast %cst_34 : f32 to vector<1x1x1xf32>
    %73 = arith.addf %69, %72 : vector<1x1x1xf32>
    %74 = math.rsqrt %73 : vector<1x1x1xf32>
    %75 = vector.broadcast %74 : vector<1x1x1xf32> to vector<1x16x16xf32>
    %76 = arith.mulf %71, %75 : vector<1x16x16xf32>
    %c0_35 = arith.constant 0 : index
    %c0_36 = arith.constant 0 : index
    %c0_37 = arith.constant 0 : index
    %77 = vector.load %arg2[%c0_35, %c0_36, %c0_37] : memref<1x16x16xf32, #tpu.memory_space<vmem>>, vector<1x16x16xf32>
    tpu.vector_store %arg2[%c0_35, %c0_36, %c0_37], %76 {strides = array<i32>} : memref<1x16x16xf32, #tpu.memory_space<vmem>>, vector<1x16x16xf32>,
    return
  }
  func.func @transform_0(%arg0: i32) -> (i32, i32, i32, i32) {
    %c0_i32 = arith.constant 0 : i32
    %c0_i32_0 = arith.constant 0 : i32
    %c0_i32_1 = arith.constant 0 : i32
    %c0_i32_2 = arith.constant 0 : i32
    return %arg0, %c0_i32, %c0_i32_0, %c0_i32_1 : i32, i32, i32, i32
  }
  func.func @transform_1(%arg0: i32) -> (i32, i32, i32) {
    %c0_i32 = arith.constant 0 : i32
    %c0_i32_0 = arith.constant 0 : i32
    %c0_i32_1 = arith.constant 0 : i32
    return %arg0, %c0_i32, %c0_i32_0 : i32, i32, i32
  }
}

</mosaic_0001>

<llo_original>
// kernel: tpu_custom_call.1
$region0: #{tpu_custom_call.1}
  #allocation0 [shape = 'u32[]', space=smem, size = 0x4, offset = 0x4, fixed_abs, tag = 'smem constant byte address 0x4 - core index']
  #allocation1 [shape = 'u32[144,128]{1,0:T(1,128)}', space=vmem, size = 0x12000, scoped, tag = 'internal scratch']
  #allocation2 [shape = 'f32[1,18,18]{2,1,0:T(8,128)}', space=vmem, size = 0x3000, scoped, tag = 'scratch operand']
  %s0 = inlined_call_operand.hbm [shape: f32[2,4,16,16], index: 0, kind: input, shape index: {}]
  %s1 = inlined_call_operand.hbm [shape: f32[2,16,16], index: 1, kind: output, shape index: {}]
  %s2 = sld [smem:[#allocation0]]
  $region41: #{tpu_custom_call.1} parent=0
    _
  %s4 = ssub.s32 1, %s2
  %s5 = scalar_select 0, %s4, %s2
  $region1: #{tpu_custom_call.1} parent=0
    #allocation3 [shape = 'u8[49152]{0}', space=vmem, size = 0xc000, scoped, tag = 'input window, operand 0']
    #allocation4 [shape = 's32[2]{0}', space=sflag, size = 0x8, scoped, tag = 'scoped memory for tpu_custom_call.1']
    #allocation5 [shape = 's32[2]{0}', space=sflag, size = 0x8, scoped, tag = 'scoped memory for tpu_custom_call.1']
    #allocation6 [shape = 'u8[16384]{0}', space=vmem, size = 0x4000, scoped, tag = 'output window, operand 0']
    %6 = vsyncpa [#allocation4], 0
    %s7 = scalar_lea.sflag [#allocation4], 1
    %8 = vsyncpa %s7, 0
    %9 = vsyncpa [#allocation5], 0
    %s10 = scalar_lea.sflag [#allocation5], 1
    %11 = vsyncpa %s10, 0
    loop: start=0, step=1, limit=4
    $region2: #{tpu_custom_call.1} parent=1 // loop_pre_header
      _
    $region3: #{tpu_custom_call.1} parent=1 // loop_header
      %s13 = sphi 0, %s17
      %p14 = scmp.ge.s32.totalorder %s13, 4
      %s23 = sphi 0, %s25
      %s26 = sphi 0, %s23
      %s27 = sphi 0, %s26
      %s43 = sphi 0, %s27
      %s49 = sphi 0, %s51
      %s52 = sphi 0, %s49
      %s53 = sphi 0, %s52
      %s69 = sphi 0, %s53
    $region4: #{tpu_custom_call.1} parent=1 // loop_header_branch
      %16 = sbr.rel (%p14) target = $region8
    $region5: #{tpu_custom_call.1} parent=1 // loop_body
      %s18 = ssub.s32 %s13, 1
      %s19 = ssub.s32 %s13, 2
      %s20 = sadd.s32 %s13, 1
      %s21 = ssub.s32 %s13, %s20
      %p22 = scmp.eq.s32.totalorder %s21, 0
      %s24 = sadd.s32 %s23, 1
      %s25 = scalar_select %p22, %s23, %s24
      %p28 = pneg %p22
      %p29 = scmp.eq.s32.totalorder %s13, 1
      %p30 = por %p28, %p29
      %p31 = scmp.ne.s32.totalorder %s23, %s26
      %p32 = scmp.eq.s32.totalorder %s13, 0
      %p33 = por %p31, %p32
      %p34 = scmp.ne.s32.totalorder %s23, %s26
      %p35 = scmp.eq.s32.totalorder %s18, 1
      %p36 = por %p34, %p35
      %p37 = scmp.ne.s32.totalorder %s26, %s27
      %p38 = scmp.eq.s32.totalorder %s18, 0
      %p39 = por %p37, %p38
      %p40 = scmp.ne.s32.totalorder %s26, %s27
      %p41 = scmp.eq.s32.totalorder %s19, 1
      %p42 = por %p40, %p41
      %p44 = scmp.ne.s32.totalorder %s27, %s43
      %p45 = scmp.eq.s32.totalorder %s19, 0
      %p46 = por %p44, %p45
      %s47 = ssub.s32 %s13, %s20
      %p48 = scmp.eq.s32.totalorder %s47, 0
      %s50 = sadd.s32 %s49, 1
      %s51 = scalar_select %p48, %s49, %s50
      %p54 = pneg %p48
      %p55 = scmp.eq.s32.totalorder %s13, 1
      %p56 = por %p54, %p55
      %p57 = scmp.ne.s32.totalorder %s49, %s52
      %p58 = scmp.eq.s32.totalorder %s13, 0
      %p59 = por %p57, %p58
      %p60 = scmp.ne.s32.totalorder %s49, %s52
      %p61 = scmp.eq.s32.totalorder %s18, 1
      %p62 = por %p60, %p61
      %p63 = scmp.ne.s32.totalorder %s52, %s53
      %p64 = scmp.eq.s32.totalorder %s18, 0
      %p65 = por %p63, %p64
      %p66 = scmp.ne.s32.totalorder %s52, %s53
      %p67 = scmp.eq.s32.totalorder %s19, 1
      %p68 = por %p66, %p67
      %p70 = scmp.ne.s32.totalorder %s53, %s69
      %p71 = scmp.eq.s32.totalorder %s19, 0
      %p72 = por %p70, %p71
      %p73 = scmp.le.s32.totalorder 1, %s13
      %p74 = scmp.lt.s32.totalorder %s13, 3
      %p75 = pnand %p73, %p74
      %p76 = pneg %p75
      // Predicated region
      $region9: #{tpu_custom_call.1} parent=5 // pred_check
        _
      $region10: #{tpu_custom_call.1} parent=5 // pred_check_branch
        %78 = sbr.rel (%p75) target = $region12
      $region11: #{tpu_custom_call.1} parent=5 // pred_region
        %s79 = ssub.s32 %s13, 1
      $region12: #{tpu_custom_call.1} parent=5 // pred_fallthru
        _
      %p80 = scmp.lt.s32.totalorder %s13, 2
      // Predicated region
      $region13: #{tpu_custom_call.1} parent=5 // pred_check
        %p81 = pneg %p80
      $region14: #{tpu_custom_call.1} parent=5 // pred_check_branch
        %83 = sbr.rel (%p81) target = $region16
      $region15: #{tpu_custom_call.1} parent=5 // pred_region
        // Predicated region
        $region17: #{tpu_custom_call.1} parent=15 // pred_check
          %p84 = pneg %p33
        $region18: #{tpu_custom_call.1} parent=15 // pred_check_branch
          %86 = sbr.rel (%p84) target = $region20
        $region19: #{tpu_custom_call.1} parent=15 // pred_region
          %s87 = sand.u32 %s23, 1
          %s88 = scalar_lea.sflag [#allocation4], %s87
          %s89 = sand.u32 %s23, 1
          %s90 = smul.addr %s89, 48
          %s91 = scalar_lea.vmem [#allocation3], %s90
          %s93 = ssub.s32 768, 768
          %94 = vsyncadd %s88, %s93
          %s95 = smul.addr %s13, 8
          %s96 = smul.addr %s95, 128
          %s97 = scalar_lea.hbm %s0, %s96
          %s98 = sshll.u32 %s91, 4
          %s99 = int_to_ptr.vmem [resolvable:$true] %s98
          %104 = dma.hbm_to_vmem [thread:$0]  %s97, 768, %s99, %s88, 128, 128, 8
        $region20: #{tpu_custom_call.1} parent=15 // pred_fallthru
          _
      $region16: #{tpu_custom_call.1} parent=5 // pred_fallthru
        _
      %p105 = scmp.le.s32.totalorder 1, %s13
      %p106 = scmp.lt.s32.totalorder %s13, 3
      %p107 = pnand %p105, %p106
      %p108 = pneg %p107
      // Predicated region
      $region21: #{tpu_custom_call.1} parent=5 // pred_check
        _
      $region22: #{tpu_custom_call.1} parent=5 // pred_check_branch
        %110 = sbr.rel (%p107) target = $region24
      $region23: #{tpu_custom_call.1} parent=5 // pred_region
        %s111 = ssub.s32 %s13, 1
        %s112 = sand.u32 %s26, 1
        %s113 = scalar_lea.sflag [#allocation4], %s112
        %s114 = sand.u32 %s26, 1
        %s115 = smul.addr %s114, 48
        %s116 = scalar_lea.vmem [#allocation3], %s115
        // Predicated region
        $region25: #{tpu_custom_call.1} parent=23 // pred_check
          %p117 = pneg %p39
        $region26: #{tpu_custom_call.1} parent=23 // pred_check_branch
          %119 = sbr.rel (%p117) target = $region28
        $region27: #{tpu_custom_call.1} parent=23 // pred_region
          %120 = dma.done %s113, 768
        $region28: #{tpu_custom_call.1} parent=23 // pred_fallthru
          _
        %s121 = sand.u32 %s26, 1
        %s122 = scalar_lea.sflag [#allocation4], %s121
        %s123 = sand.u32 %s26, 1
        %s124 = smul.addr %s123, 48
        %s125 = scalar_lea.vmem [#allocation3], %s124
        %p126 = pneg %p39
        %p127 = pneg %p36
        %p128 = pneg %p65
        %p129 = pneg %p62
        %s130 = sand.u32 %s52, 1
        %s131 = scalar_lea.sflag [#allocation5], %s130
        %s132 = sand.u32 %s52, 1
        %s133 = smul.addr %s132, 16
        %s134 = scalar_lea.vmem [#allocation6], %s133
        %v135 = vld [vmem:[%s116] sm:$0xff]
        %v136 = vld [vmem:[%s116 + $0x8] sm:$0xff]
        %v137 = vld [vmem:[%s116 + $0x10] sm:$0xff]
        %v138 = vld [vmem:[%s116 + $0x18] sm:$0xff]
        %v139 = vld [vmem:[%s116 + $0x20] sm:$0xff]
        %v140 = vld [vmem:[%s116 + $0x28] sm:$0xff]
        %v141 = vmul.f32 %v135, 0.3
        %v142 = vmul.f32 %v136, 0.3
        %v143 = vmul.f32 %v137, 0.59
        %v144 = vmul.f32 %v138, 0.59
        %v145 = vadd.f32 %v141, %v143
        %v146 = vadd.f32 %v142, %v144
        %v147 = vmul.f32 %v139, 0.11
        %v148 = vmul.f32 %v140, 0.11
        %v149 = vadd.f32 %v145, %v147
        %v150 = vadd.f32 %v146, %v148
        %vm151 = vcmask 146432
        %152 = vst.msk [vmem:[#allocation2] sm:$0xff] %vm151, 0.0
        %153 = vst.msk [vmem:[#allocation2 + $0x8] sm:$0xff] %vm151, 0.0
        %vm154 = vcmask 140288
        %155 = vst.msk [vmem:[#allocation2 + $0x10] sm:$0x3] %vm154, 0.0
        %158 = vrot.lane.b32.xlu0 %v149, 1
        %v159 = vpop.permute.xlu0 %158
        %160 = vrot.lane.b32.xlu0 %v150, 1
        %v161 = vpop.permute.xlu0 %160
        %vm164 = vcmask 138248
        %165 = vst.msk [vmem:[#allocation2 + $0x1] sm:$0xff] %vm164, %v159
        %166 = vst.msk [vmem:[#allocation2 + $0x9] sm:$0xff] %vm164, %v161
        %v167 = vld [vmem:[#allocation2] sm:$0xff]
        %v168 = vld [vmem:[#allocation2 + $0x8] sm:$0xff]
        %v169 = vld [vmem:[#allocation2 + $0x10] sm:$0x3]
        %v170 = vmul.f32 %v167, 2.0
        %v171 = vmul.f32 %v168, 2.0
        %v172 = vmul.f32 %v169, 2.0
        %vm176 = vcmask 1046528
        %v177 = vrot.slane %v170, 1
        %v178 = vrot.slane %v171, 1
        %v179 = vsel %vm176, %v177, %v178
        %v180 = vrot.slane %v172, 1
        %v181 = vsel %vm176, %v178, %v180
        %v185 = vadd.f32 %v167, %v179
        %v186 = vadd.f32 %v168, %v181
        %v187 = vadd.f32 %v169, %v180
        %v188 = vmul.f32 %v167, 128.0
        %v189 = vmul.f32 %v168, 128.0
        %vm192 = vcmask 1040384
        %v193 = vrot.slane %v188, 7
        %v194 = vrot.slane %v189, 7
        %v195 = vsel %vm192, %v193, %v194
        %v199 = vadd.f32 %v185, %v193
        %v200 = vadd.f32 %v186, %v195
        %v201 = vadd.f32 %v187, %v194
        %v202 = vmul.f32 %v167, 4.0
        %v203 = vmul.f32 %v168, 4.0
        %v204 = vmul.f32 %v169, 4.0
        %v208 = vrot.slane %v202, 1
        %v209 = vrot.slane %v203, 1
        %v210 = vsel %vm176, %v208, %v209
        %v211 = vrot.slane %v204, 1
        %v212 = vsel %vm176, %v209, %v211
        %213 = vrot.lane.b32.xlu0 %v210, 127
        %v214 = vpop.permute.xlu0 %213
        %215 = vrot.lane.b32.xlu0 %v212, 127
        %v216 = vpop.permute.xlu0 %215
        %217 = vrot.lane.b32.xlu0 %v211, 127
        %v218 = vpop.permute.xlu0 %217
        %v222 = vadd.f32 %v199, %v214
        %v223 = vadd.f32 %v200, %v216
        %v224 = vadd.f32 %v201, %v218
        %v225 = vmul.f32 %v167, 64.0
        %v226 = vmul.f32 %v168, 64.0
        %v229 = vrot.slane %v225, 7
        %v230 = vrot.slane %v226, 7
        %v231 = vsel %vm192, %v229, %v230
        %232 = vrot.lane.b32.xlu0 %v229, 127
        %v233 = vpop.permute.xlu0 %232
        %234 = vrot.lane.b32.xlu0 %v231, 127
        %v235 = vpop.permute.xlu0 %234
        %236 = vrot.lane.b32.xlu0 %v230, 127
        %v237 = vpop.permute.xlu0 %236
        %v241 = vadd.f32 %v222, %v233
        %v242 = vadd.f32 %v223, %v235
        %v243 = vadd.f32 %v224, %v237
        %v244 = vmul.f32 %v167, 8.0
        %v245 = vmul.f32 %v168, 8.0
        %v246 = vmul.f32 %v169, 8.0
        %v250 = vrot.slane %v244, 1
        %v251 = vrot.slane %v245, 1
        %v252 = vsel %vm176, %v250, %v251
        %v253 = vrot.slane %v246, 1
        %v254 = vsel %vm176, %v251, %v253
        %255 = vrot.lane.b32.xlu0 %v252, 126
        %v256 = vpop.permute.xlu0 %255
        %257 = vrot.lane.b32.xlu0 %v254, 126
        %v258 = vpop.permute.xlu0 %257
        %259 = vrot.lane.b32.xlu0 %v253, 126
        %v260 = vpop.permute.xlu0 %259
        %v264 = vadd.f32 %v241, %v256
        %v265 = vadd.f32 %v242, %v258
        %v266 = vadd.f32 %v243, %v260
        %v267 = vmul.f32 %v167, 16.0
        %v268 = vmul.f32 %v168, 16.0
        %v269 = vmul.f32 %v169, 16.0
        %273 = vrot.lane.b32.xlu0 %v267, 126
        %v274 = vpop.permute.xlu0 %273
        %275 = vrot.lane.b32.xlu0 %v268, 126
        %v276 = vpop.permute.xlu0 %275
        %277 = vrot.lane.b32.xlu0 %v269, 126
        %v278 = vpop.permute.xlu0 %277
        %v282 = vadd.f32 %v264, %v274
        %v283 = vadd.f32 %v265, %v276
        %v284 = vadd.f32 %v266, %v278
        %v285 = vmul.f32 %v167, 32.0
        %v286 = vmul.f32 %v168, 32.0
        %v289 = vrot.slane %v285, 7
        %v290 = vrot.slane %v286, 7
        %v291 = vsel %vm192, %v289, %v290
        %292 = vrot.lane.b32.xlu0 %v289, 126
        %v293 = vpop.permute.xlu0 %292
        %294 = vrot.lane.b32.xlu0 %v291, 126
        %v295 = vpop.permute.xlu0 %294
        %296 = vrot.lane.b32.xlu0 %v290, 126
        %v297 = vpop.permute.xlu0 %296
        %v301 = vadd.f32 %v282, %v293
        %v302 = vadd.f32 %v283, %v295
        %v303 = vadd.f32 %v284, %v297
        %v304 = vmul.f32 %v149, 255.0
        %v305 = vmul.f32 %v150, 255.0
        %v309 = vrot.slane %v301, 1
        %v310 = vrot.slane %v302, 1
        %v311 = vsel %vm176, %v309, %v310
        %v312 = vrot.slane %v303, 1
        %v313 = vsel %vm176, %v310, %v312
        %v316 = vsub.f32 %v304, %v311
        %v317 = vsub.f32 %v305, %v313
        %vm318 = vcmask 130048
        %v319 = vsel %vm318, %v316, 0.0
        %320 = vadd.xlane.f32.xlu0 %v319
        %v321 = vpop.xlane.xlu0 %320
        %v322 = vsel %vm318, %v317, 0.0
        %323 = vadd.xlane.f32.xlu0 %v322
        %v324 = vpop.xlane.xlu0 %323
        %v325 = vadd.f32 %v321, %v324
        %v326 = vrot.slane %v325, 4
        %v327 = vadd.f32 %v325, %v326
        %v328 = vrot.slane %v327, 2
        %v329 = vadd.f32 %v327, %v328
        %v330 = vrot.slane %v329, 1
        %v331 = vadd.f32 %v329, %v330
        %v332 = vmul.f32 %v316, %v316
        %v333 = vmul.f32 %v317, %v317
        %v334 = vsel %vm318, %v332, 0.0
        %335 = vadd.xlane.f32.xlu0 %v334
        %v336 = vpop.xlane.xlu0 %335
        %v337 = vsel %vm318, %v333, 0.0
        %338 = vadd.xlane.f32.xlu0 %v337
        %v339 = vpop.xlane.xlu0 %338
        %v340 = vadd.f32 %v336, %v339
        %v341 = vrot.slane %v340, 4
        %v342 = vadd.f32 %v340, %v341
        %v343 = vrot.slane %v342, 2
        %v344 = vadd.f32 %v342, %v343
        %v345 = vrot.slane %v344, 1
        %v346 = vadd.f32 %v344, %v345
        %v347 = vrcp.pop 256.0
        %v348 = vmul.f32 %v331, %v347
        %v349 = vmul.f32 %v346, %v347
        %v350 = vmul.f32 %v348, %v348
        %v351 = vsub.f32 %v349, %v350
        %v352 = vsub.f32 %v316, %v348
        %v353 = vsub.f32 %v317, %v348
        %v354 = vadd.f32 %v351, 2.601
        %v355 = vrsqrt.pop %v354
        %v356 = vmul.f32 %v352, %v355
        %v357 = vmul.f32 %v353, %v355
        %358 = vst.msk [vmem:[%s134] sm:$0xff] %vm318, %v356
        %359 = vst.msk [vmem:[%s134 + $0x8] sm:$0xff] %vm318, %v357
        %s360 = sand.u32 %s52, 1
        %s361 = scalar_lea.sflag [#allocation5], %s360
        %s362 = sand.u32 %s52, 1
        %s363 = smul.addr %s362, 16
        %s364 = scalar_lea.vmem [#allocation6], %s363
        // Predicated region
        $region29: #{tpu_custom_call.1} parent=23 // pred_check
          %p365 = pneg %p62
        $region30: #{tpu_custom_call.1} parent=23 // pred_check_branch
          %367 = sbr.rel (%p365) target = $region32
        $region31: #{tpu_custom_call.1} parent=23 // pred_region
          %s369 = ssub.s32 256, 256
          %370 = vsyncadd %s361, %s369
          %s371 = smul.addr %s18, 2
          %s372 = smul.addr %s371, 128
          %s373 = scalar_lea.hbm %s1, %s372
          %s374 = sshll.u32 %s364, 4
          %s375 = int_to_ptr.vmem [resolvable:$true] %s374
          %380 = dma.vmem_to_hbm [thread:$0]  %s375, 256, %s373, %s361, 128, 128, 8
        $region32: #{tpu_custom_call.1} parent=23 // pred_fallthru
          _
      $region24: #{tpu_custom_call.1} parent=5 // pred_fallthru
        _
      %p381 = scmp.le.s32.totalorder 2, %s13
      // Predicated region
      $region33: #{tpu_custom_call.1} parent=5 // pred_check
        %p382 = pneg %p381
      $region34: #{tpu_custom_call.1} parent=5 // pred_check_branch
        %384 = sbr.rel (%p382) target = $region36
      $region35: #{tpu_custom_call.1} parent=5 // pred_region
        %s385 = ssub.s32 %s13, 2
        // Predicated region
        $region37: #{tpu_custom_call.1} parent=35 // pred_check
          %p386 = pneg %p68
        $region38: #{tpu_custom_call.1} parent=35 // pred_check_branch
          %388 = sbr.rel (%p386) target = $region40
        $region39: #{tpu_custom_call.1} parent=35 // pred_region
          %s389 = sand.u32 %s53, 1
          %s390 = scalar_lea.sflag [#allocation5], %s389
          %s391 = sand.u32 %s53, 1
          %s392 = smul.addr %s391, 16
          %s393 = scalar_lea.vmem [#allocation6], %s392
          %394 = dma.done %s390, 256
        $region40: #{tpu_custom_call.1} parent=35 // pred_fallthru
          _
      $region36: #{tpu_custom_call.1} parent=5 // pred_fallthru
        _
    $region6: #{tpu_custom_call.1} parent=1 // loop_footer
      %s17 = sadd.s32 1, %s13
    $region7: #{tpu_custom_call.1} parent=1 // loop_footer_branch
      %12 = sbr.rel target = $region3
    $region8: #{tpu_custom_call.1} parent=1 // loop_exit
      _
    %395 = vsyncpa [#allocation4], 1
    %s396 = scalar_lea.sflag [#allocation4], 1
    %397 = vsyncpa %s396, 1
    %398 = vsyncpa [#allocation5], 1
    %s399 = scalar_lea.sflag [#allocation5], 1
    %400 = vsyncpa %s399, 1

</llo_original>
